<compile_context>
chip_gen: v5e
topology: v5e:2x2
jax: 0.10.0
libtpu: 0.0.40
codegen_flags: <defaults>
</compile_context>

<pallas_src>
import functools

import jax
import jax.numpy as jnp
from jax.experimental import pallas as pl
from jax.experimental.pallas import tpu as pltpu


# ----------------------------------------------------------------------------
# Pallas kernels
# ----------------------------------------------------------------------------
def _ode_forward_kernel(x_ref, c_ref, w1x_ref, w1c_ref, b1_ref, w2_ref, b2_ref,
                        o_ref):
    """One ODE evaluation per grid step.

    out = tanh(tanh(concat(x, c) @ W1 + b1) @ W2 + b2), with the concat fused
    away via the split-W1 trick.  x_ref / o_ref are (1, B, feat) blocks along
    the grid axis; every other operand is a full-array, VMEM-resident block.
    """
    x = x_ref[0]                                               # [B, latent]
    h = jnp.tanh(
        jnp.dot(x, w1x_ref[...], preferred_element_type=jnp.float32)
        + jnp.dot(c_ref[...], w1c_ref[...], preferred_element_type=jnp.float32)
        + b1_ref[...]
    )                                                          # [B, hidden]
    o_ref[0] = jnp.tanh(
        jnp.dot(h, w2_ref[...], preferred_element_type=jnp.float32) + b2_ref[...]
    ).astype(o_ref.dtype)


def _set_control_kernel(dom_ref, we_ref, be_ref, ctrl_ref, o_ref, *, k_shot):
    """Fused:  concat( mean_k( flatten(domains) @ We + be ), controls ).

    The mean over k_shot commutes with the affine encoder, so we average the
    flattened domains first (k_shot is a small static unroll) and run a single
    matmul, then write the concatenated control vector in one lane-dense store.
    dom_ref is laid out [k_shot, B, timesteps*in_dim].
    """
    acc = dom_ref[0].astype(jnp.float32)                       # [B, T*in_dim]
    for j in range(1, k_shot):
        acc = acc + dom_ref[j]
    dom_mean = acc * (1.0 / k_shot)
    emb = (
        jnp.dot(dom_mean, we_ref[...], preferred_element_type=jnp.float32)
        + be_ref[...]
    )                                                          # [B, control_dim]
    o_ref[...] = jnp.concatenate((emb, ctrl_ref[...]), axis=-1).astype(o_ref.dtype)


# ----------------------------------------------------------------------------
# Wrappers (single jit each; all glue is compiled into one executable)
# ----------------------------------------------------------------------------
@jax.jit
def ode_forward_stacked(xs, controls_cat, w1x, w1c, b1, w2, b2):
    """Evaluate the dynamics MLP for S stacked states in one pallas_call.

    xs: [S, B, latent]  ->  [S, B, latent].  Weights/biases/controls are kept
    VMEM-resident across the grid (constant index_maps); only xs streams.
    """
    S, B, L = xs.shape
    H = w1x.shape[1]
    Lout = w2.shape[1]
    b1_2d = b1.reshape(1, H)
    b2_2d = b2.reshape(1, Lout)
    return pl.pallas_call(
        _ode_forward_kernel,
        out_shape=jax.ShapeDtypeStruct((S, B, Lout), xs.dtype),
        grid=(S,),
        in_specs=[
            pl.BlockSpec((1, B, L), lambda s: (s, 0, 0)),          # xs (streamed)
            pl.BlockSpec(controls_cat.shape, lambda s: (0, 0)),    # resident
            pl.BlockSpec(w1x.shape, lambda s: (0, 0)),             # resident
            pl.BlockSpec(w1c.shape, lambda s: (0, 0)),             # resident
            pl.BlockSpec(b1_2d.shape, lambda s: (0, 0)),           # resident
            pl.BlockSpec(w2.shape, lambda s: (0, 0)),              # resident
            pl.BlockSpec(b2_2d.shape, lambda s: (0, 0)),           # resident
        ],
        out_specs=pl.BlockSpec((1, B, Lout), lambda s: (s, 0, 0)),
        compiler_params=pltpu.CompilerParams(
            dimension_semantics=("parallel",),  # lets v7x shard evals across 2 TCs
        ),
    )(xs, controls_cat, w1x, w1c, b1_2d, w2, b2_2d)


@jax.jit
def ode_forward(x, controls_cat, w1x, w1c, b1, w2, b2):
    """Single forward(t, x) evaluation == S=1 case of the stacked kernel."""
    return ode_forward_stacked(x[None], controls_cat, w1x, w1c, b1, w2, b2)[0]


@jax.jit
def encode_controls(domains, controls, we, be):
    """set_control fused kernel: encoder linear + mean over k_shot + concat."""
    B = controls.shape[0]
    k_shot = domains.shape[1]
    F = domains.shape[2] * domains.shape[3]          # timesteps * in_dim
    C = we.shape[1]
    # [B, k, T, in] -> [k, B, T*in]  (row b of slice j == (batch b, shot j))
    dom = domains.reshape(B, k_shot, F).transpose(1, 0, 2)
    be_2d = be.reshape(1, C)
    kernel = functools.partial(_set_control_kernel, k_shot=k_shot)
    return pl.pallas_call(
        kernel,
        out_shape=jax.ShapeDtypeStruct((B, 2 * C), controls.dtype),
        in_specs=[
            pl.BlockSpec(dom.shape, lambda: (0, 0, 0)),
            pl.BlockSpec(we.shape, lambda: (0, 0)),
            pl.BlockSpec(be_2d.shape, lambda: (0, 0)),
            pl.BlockSpec(controls.shape, lambda: (0, 0)),
        ],
        out_specs=pl.BlockSpec((B, 2 * C), lambda: (0, 0)),
    )(dom, we, be_2d, controls)


# ----------------------------------------------------------------------------
# ODEFunction (JAX/Pallas version)
# ----------------------------------------------------------------------------
class Args:
    latent_dim = 8
    control_dim = 4
    hidden_dim = 32
    timesteps = 8
    in_dim = 4
    k_shot = 2
    batch_size = 4


class ODEFunctionPallas:
    def __init__(self, args, key):
        self.args = args
        d_in = args.latent_dim + args.control_dim * 2
        k1, k2, k3, k4, k5, k6 = jax.random.split(key, 6)

        def uinit(k, shape, fan_in):
            bound = 1.0 / jnp.sqrt(fan_in)
            return jax.random.uniform(
                k, shape, jnp.float32, minval=-bound, maxval=bound
            )

        # dynamics_net weights (stored as [in, out] = W.T relative to PyTorch),
        # with W1 pre-split into its x-rows and controls-rows for concat fusion.
        w1 = uinit(k1, (d_in, args.hidden_dim), d_in)
        self.w1x = w1[: args.latent_dim]            # [latent, hidden]
        self.w1c = w1[args.latent_dim :]            # [2*control, hidden]
        self.b1 = uinit(k2, (args.hidden_dim,), d_in)
        self.w2 = uinit(k3, (args.hidden_dim, args.latent_dim), args.hidden_dim)
        self.b2 = uinit(k4, (args.latent_dim,), args.hidden_dim)
        # domain_encoder linear
        enc_in = args.timesteps * args.in_dim
        self.we = uinit(k5, (enc_in, args.control_dim), enc_in)
        self.be = uinit(k6, (args.control_dim,), enc_in)

        self.controls = None

    def set_control(self, domains, controls):
        # One fused pallas_call: flatten -> linear -> mean(k_shot) -> concat.
        self.controls = encode_controls(domains, controls, self.we, self.be)

    def forward(self, t, x):
        # One fused pallas_call; concat(x, controls) is folded into split-W1.
        return ode_forward(
            x, self.controls, self.w1x, self.w1c, self.b1, self.w2, self.b2
        )

    def forward_stacked(self, t, xs):
        # Amortized path: evaluate many ODE states [S, B, latent] in ONE call
        # with weights VMEM-resident (this is where a solver's stage loop
        # should feed its evaluation points).
        return ode_forward_stacked(
            xs, self.controls, self.w1x, self.w1c, self.b1, self.w2, self.b2
        )


# ----------------------------------------------------------------------------
# Pure-JAX references for correctness
# ----------------------------------------------------------------------------
def reference_forward(model, x):
    w1 = jnp.concatenate((model.w1x, model.w1c), axis=0)
    x_cat = jnp.concatenate((x, model.controls), axis=-1)
    h = jnp.tanh(x_cat @ w1 + model.b1)
    return jnp.tanh(h @ model.w2 + model.b2)


def reference_set_control(model, domains, controls):
    a = model.args
    flat = domains.reshape(a.batch_size * a.k_shot, -1)
    emb = flat @ model.we + model.be
    emb = emb.reshape(a.batch_size, a.k_shot, a.control_dim).mean(axis=1)
    return jnp.concatenate((emb, controls), axis=-1)


if __name__ == "__main__":
    args = Args()
    key = jax.random.PRNGKey(0)
    kparam, kdom, kctrl, kx, kxs = jax.random.split(key, 5)

    model = ODEFunctionPallas(args, kparam)

    # domains: [batch_size, k_shot, timesteps, in_dim]
    domains = jax.random.normal(
        kdom,
        (args.batch_size, args.k_shot, args.timesteps, args.in_dim),
        jnp.float32,
    )
    controls = jax.random.normal(
        kctrl, (args.batch_size, args.control_dim), jnp.float32
    )
    x = jax.random.normal(kx, (args.batch_size, args.latent_dim), jnp.float32)
    t = jnp.float32(0.0)

    # --- set_control (fused encoder + mean + concat kernel) ---
    model.set_control(domains, controls)
    ctrl_out = jax.block_until_ready(model.controls)
    ctrl_ref = reference_set_control(model, domains, controls)
    assert ctrl_out.shape == (args.batch_size, 2 * args.control_dim)
    assert jnp.allclose(ctrl_out, ctrl_ref, rtol=1e-5, atol=1e-5)

    # --- forward (single evaluation, fused concat + 2-layer tanh MLP) ---
    out = jax.block_until_ready(model.forward(t, x))
    ref = reference_forward(model, x)
    assert out.shape == (args.batch_size, args.latent_dim)
    assert jnp.allclose(out, ref, rtol=1e-5, atol=1e-5)

    # --- amortized path: 16 stacked evaluation points, one pallas_call ---
    xs = jax.random.normal(
        kxs, (16, args.batch_size, args.latent_dim), jnp.float32
    )
    outs = jax.block_until_ready(model.forward_stacked(t, xs))
    refs = jax.vmap(lambda xi: reference_forward(model, xi))(xs)
    assert outs.shape == (16, args.batch_size, args.latent_dim)
    assert jnp.allclose(outs, refs, rtol=1e-5, atol=1e-5)

    print("KERNEL_OK")
</pallas_src>

<mosaic_0001>
module attributes {stable_mosaic.version = 11 : i64} {
  func.func @_set_control_kernel(%arg0: memref<2x4x32xf32, #tpu.memory_space<vmem>>, %arg1: memref<32x4xf32, #tpu.memory_space<vmem>>, %arg2: memref<1x4xf32, #tpu.memory_space<vmem>>, %arg3: memref<4x4xf32, #tpu.memory_space<vmem>>, %arg4: memref<4x8xf32, #tpu.memory_space<vmem>>) attributes {dimension_semantics = [], scalar_prefetch = 0 : i64, scratch_operands = 0 : i64, tpu.core_type = #tpu.core_type<tc>} {
    %c0 = arith.constant 0 : index
    %c0_0 = arith.constant 0 : index
    %c0_1 = arith.constant 0 : index
    %0 = vector.load %arg0[%c0, %c0_0, %c0_1] : memref<2x4x32xf32, #tpu.memory_space<vmem>>, vector<1x4x32xf32>
    %1 = vector.shape_cast %0 : vector<1x4x32xf32> to vector<4x32xf32>
    %c1 = arith.constant 1 : index
    %c0_2 = arith.constant 0 : index
    %c0_3 = arith.constant 0 : index
    %2 = vector.load %arg0[%c1, %c0_2, %c0_3] : memref<2x4x32xf32, #tpu.memory_space<vmem>>, vector<1x4x32xf32>
    %3 = vector.shape_cast %2 : vector<1x4x32xf32> to vector<4x32xf32>
    %4 = arith.addf %1, %3 : vector<4x32xf32>
    %cst = arith.constant 5.000000e-01 : f32
    %5 = vector.broadcast %cst : f32 to vector<4x32xf32>
    %6 = arith.mulf %4, %5 : vector<4x32xf32>
    %c0_4 = arith.constant 0 : index
    %c0_5 = arith.constant 0 : index
    %7 = vector.load %arg1[%c0_4, %c0_5] : memref<32x4xf32, #tpu.memory_space<vmem>>, vector<32x4xf32>
    %cst_6 = arith.constant dense<0.000000e+00> : vector<4x4xf32>
    %8 = tpu.matmul %6, %7, %cst_6 {dimension_numbers = #tpu.dot_dimension_numbers<[1], [0], [0], [1], [0, 0, 1, 1], [], []>} : vector<4x32xf32>, vector<32x4xf32>, vector<4x4xf32> -> vector<4x4xf32>
    %c0_7 = arith.constant 0 : index
    %c0_8 = arith.constant 0 : index
    %9 = vector.load %arg2[%c0_7, %c0_8] : memref<1x4xf32, #tpu.memory_space<vmem>>, vector<1x4xf32>
    %10 = vector.broadcast %9 : vector<1x4xf32> to vector<4x4xf32>
    %11 = arith.addf %8, %10 : vector<4x4xf32>
    %c0_9 = arith.constant 0 : index
    %c0_10 = arith.constant 0 : index
    %12 = vector.load %arg3[%c0_9, %c0_10] : memref<4x4xf32, #tpu.memory_space<vmem>>, vector<4x4xf32>
    %13 = tpu.concatenate %11, %12 in 1 : vector<4x4xf32>, vector<4x4xf32> -> vector<4x8xf32>
    %c0_11 = arith.constant 0 : index
    %c0_12 = arith.constant 0 : index
    %14 = vector.load %arg4[%c0_11, %c0_12] : memref<4x8xf32, #tpu.memory_space<vmem>>, vector<4x8xf32>
    tpu.vector_store %arg4[%c0_11, %c0_12], %13 {strides = array<i32>} : memref<4x8xf32, #tpu.memory_space<vmem>>, vector<4x8xf32>,
    return
  }
}

</mosaic_0001>

<llo_original>
// kernel: encode_controls.1
$region0: #{encode_controls.1}
  #allocation0 [shape = 'u32[]', space=smem, size = 0x4, offset = 0x4, fixed_abs, tag = 'smem constant byte address 0x4 - core index']
  #allocation1 [shape = 'u32[72,128]{1,0:T(1,128)}', space=vmem, size = 0x9000, scoped, tag = 'internal scratch']
  %s0 = inlined_call_operand.vmem [shape: f32[2,4,32], index: 0, kind: input, shape index: {}]
  %s1 = inlined_call_operand.vmem [shape: f32[32,4], index: 1, kind: input, shape index: {}]
  %s2 = inlined_call_operand.vmem [shape: f32[1,4], index: 2, kind: input, shape index: {}]
  %s3 = inlined_call_operand.vmem [shape: f32[4,4], index: 3, kind: input, shape index: {}]
  %s4 = inlined_call_operand.hbm [shape: f32[4,8], index: 4, kind: output, shape index: {}]
  %s5 = sld [smem:[#allocation0]]
  $region26: #{encode_controls.1} parent=0
    _
  %s7 = ssub.s32 1, %s5
  %s8 = scalar_select 0, %s7, %s5
  $region1: #{encode_controls.1} parent=0
    #allocation2 [shape = 'u8[2048]{0}', space=vmem, size = 0x800, scoped, tag = 'output window, operand 0, single buffered']
    #allocation3 [shape = 's32[1]{0}', space=sflag, size = 0x4, scoped, tag = 'scoped memory for encode_controls.1']
    %9 = vsyncpa [#allocation3], 0
    // Predicated region
    $region2: #{encode_controls.1} parent=1 // pred_check
      _
    $region3: #{encode_controls.1} parent=1 // pred_check_branch
      %11 = sbr.rel (0) target = $region5
    $region4: #{encode_controls.1} parent=1 // pred_region
      _
    $region5: #{encode_controls.1} parent=1 // pred_fallthru
      _
    // Predicated region
    $region6: #{encode_controls.1} parent=1 // pred_check
      _
    $region7: #{encode_controls.1} parent=1 // pred_check_branch
      %13 = sbr.rel (0) target = $region9
    $region8: #{encode_controls.1} parent=1 // pred_region
      _
    $region9: #{encode_controls.1} parent=1 // pred_fallthru
      _
    // Predicated region
    $region10: #{encode_controls.1} parent=1 // pred_check
      _
    $region11: #{encode_controls.1} parent=1 // pred_check_branch
      %15 = sbr.rel (0) target = $region13
    $region12: #{encode_controls.1} parent=1 // pred_region
      _
    $region13: #{encode_controls.1} parent=1 // pred_fallthru
      _
    // Predicated region
    $region14: #{encode_controls.1} parent=1 // pred_check
      _
    $region15: #{encode_controls.1} parent=1 // pred_check_branch
      %17 = sbr.rel (0) target = $region17
    $region16: #{encode_controls.1} parent=1 // pred_region
      _
    $region17: #{encode_controls.1} parent=1 // pred_fallthru
      _
    %v18 = vld [vmem:[%s0] sm:$0xf]
    %s19 = scalar_lea.vmem %s0, 4
    %v20 = vld [vmem:[%s19] sm:$0xf]
    %v21 = vadd.f32 %v18, %v20
    %v22 = vmul.f32 %v21, 0.5
    %v23 = vld [vmem:[%s1] sm:$0xff]
    %v24 = vld [vmem:[%s1 + $0x8] sm:$0xff]
    %v25 = vld [vmem:[%s1 + $0x10] sm:$0xff]
    %v26 = vld [vmem:[%s1 + $0x18] sm:$0xff]
    %v27 = vld [vmem:[%s2] sm:$0x1]
    %v29 = vperm.slane %v27, 0
    %vm31 = vcmask 261120
    %v33 = vsel %vm31, %v22, 0
    %35 = vmatpush.msra.mxu0 0.0
    %36 = vmatpush.msra.mxu0 0.0
    %37 = vmatpush.msra.mxu0 0.0
    %38 = vmatpush.msra.mxu0 0.0
    %39 = vmatpush.msra.mxu0 0.0
    %40 = vmatpush.msra.mxu0 0.0
    %41 = vmatpush.msra.mxu0 0.0
    %42 = vmatpush.msra.mxu0 0.0
    %43 = vmatpush.msra.mxu0 0.0
    %44 = vmatpush.msra.mxu0 0.0
    %45 = vmatpush.msra.mxu0 0.0
    %46 = vmatpush.msra.mxu0 0.0
    %47 = vmatpush.msra.mxu0 %v26
    %48 = vmatpush.msra.mxu0 %v25
    %49 = vmatpush.msra.mxu0 %v24
    %50 = vmatpush.msra.mxu0 %v23
    %51 = vmatmul.f32.gmra.mxu0 %v33
    %v52 = vpop.f32.mrf.mxu0
    %v53 = vadd.f32 %v29, %v52
    %54 = vdwg.mxu0
    %v55 = vld [vmem:[%s3] sm:$0xf]
    %57 = vrot.lane.b32.xlu0 %v55, 4
    %v58 = vpop.permute.xlu0 %57
    %vm60 = vcmask 31744
    %v61 = vsel %vm60, %v53, %v58
    %vm62 = vcmask 60416
    %63 = vst.msk [vmem:[#allocation2] sm:$0xf] %vm62, %v61
    // Predicated region
    $region18: #{encode_controls.1} parent=1 // pred_check
      _
    $region19: #{encode_controls.1} parent=1 // pred_check_branch
      %65 = sbr.rel (0) target = $region21
    $region20: #{encode_controls.1} parent=1 // pred_region
      %67 = vsyncadd [#allocation3], 0
      %s69 = sshll.u32 [#allocation2], 4
      %s70 = int_to_ptr.vmem [resolvable:$true] %s69
      %s71 = sshll.u32 %s4, 4
      %s72 = int_to_ptr.hbm [resolvable:$true] %s71
      %74 = dma.vmem_to_hbm [thread:$0]  %s70, 64, %s72, [#allocation3]
    $region21: #{encode_controls.1} parent=1 // pred_fallthru
      _
    // Predicated region
    $region22: #{encode_controls.1} parent=1 // pred_check
      _
    $region23: #{encode_controls.1} parent=1 // pred_check_branch
      %76 = sbr.rel (0) target = $region25
    $region24: #{encode_controls.1} parent=1 // pred_region
      %78 = dma.done [#allocation3], 64
    $region25: #{encode_controls.1} parent=1 // pred_fallthru
      _
    %79 = vsyncpa [#allocation3], 1

</llo_original>
